<compile_context>
chip_gen: v6e
topology: v6e:2x2x1
jax: 0.10.0
libtpu: 0.0.40
codegen_flags: <defaults>
</compile_context>

<pallas_src>
import jax
import jax.numpy as jnp
from jax.experimental import pallas as pl
from jax.experimental.pallas import tpu as pltpu


_NEG_BIG = -1e30  # -inf stand-in for padded vocab columns (never NaNs)


def _round_up(v, m):
    return ((v + m - 1) // m) * m


def _vmem_budget_bytes():
    """Physical VMEM per core with ~15% headroom for compiler scratch."""
    cap = 64 << 20  # conservative default (v7x-sized) if query unavailable
    try:
        info = pltpu.get_tpu_info()
        cap = int(getattr(info, "vmem_capacity_bytes", cap))
    except Exception:
        pass
    return min(int(cap * 0.85), 112 << 20)


def pack_generator_params(weight, bias, *, weight_dtype=jnp.bfloat16):
    """One-time packing of nn.Linear params: (V, D) -> (D, V) + narrow dtype.

    Doing the transpose/cast at parameter-init time removes a full V*D
    HBM->HBM transpose from every forward call.
    """
    V, D = weight.shape
    assert bias.shape == (V,)
    wt = jnp.asarray(weight).T.astype(weight_dtype)            # (D, V)
    b2 = jnp.asarray(bias).astype(jnp.float32).reshape(1, V)   # (1, V)
    return wt, b2


# ---------------------------------------------------------------------------
# Path A: whole vocab per row tile (fused matmul + log-softmax)
# ---------------------------------------------------------------------------

def _fused_kernel(x_ref, wt_ref, b_ref, o_ref):
    """x_ref (tm,tk) bf16, wt_ref (tk,V) bf16, b_ref (1,V) f32, o_ref (tm,V) f32.

    The f32 output block is VMEM-resident across the K (reduction) axis, so
    it is used directly as the accumulator (no scratch buffer).
    """
    k = pl.program_id(1)

    @pl.when(k == 0)
    def _():
        # Init the accumulator with the broadcast bias: removes the separate
        # `logits = acc + b` pass at finalize time.
        o_ref[...] = jnp.broadcast_to(b_ref[...], o_ref.shape)

    o_ref[...] += jnp.dot(x_ref[...], wt_ref[...],
                          preferred_element_type=jnp.float32)

    @pl.when(k == pl.num_programs(1) - 1)
    def _():
        # Numerically stable log-softmax, in place on the f32 output block.
        m = jnp.max(o_ref[...], axis=-1, keepdims=True)          # XLU reduce
        o_ref[...] = o_ref[...] - m
        lse = jnp.log(jnp.sum(jnp.exp(o_ref[...]), axis=-1, keepdims=True))
        o_ref[...] = o_ref[...] - lse


# ---------------------------------------------------------------------------
# Path B: V-tiled two-pass (for large vocab / small-VMEM parts like v7x)
#   pass 1: per (row tile, vocab tile) logits + online running log-sum-exp
#   pass 2: subtract the per-row LSE from the stored logits
# ---------------------------------------------------------------------------

def _logits_lse_kernel(x_ref, wt_ref, b_ref, logits_ref, lse_ref,
                       acc_ref, m_ref, l_ref):
    """Grid (row tiles, vocab tiles, K tiles); m/l scratch carried across j,k."""
    j = pl.program_id(1)
    k = pl.program_id(2)
    last_k = k == pl.num_programs(2) - 1

    @pl.when(jnp.logical_and(j == 0, k == 0))
    def _():
        m_ref[...] = jnp.full_like(m_ref, -jnp.inf)
        l_ref[...] = jnp.zeros_like(l_ref)

    @pl.when(k == 0)
    def _():
        acc_ref[...] = jnp.broadcast_to(b_ref[...], acc_ref.shape)

    acc_ref[...] += jnp.dot(x_ref[...], wt_ref[...],
                            preferred_element_type=jnp.float32)

    @pl.when(last_k)
    def _():
        logits = acc_ref[...]
        m_tile = jnp.max(logits, axis=-1, keepdims=True)
        m_new = jnp.maximum(m_ref[...], m_tile)
        l_ref[...] = (l_ref[...] * jnp.exp(m_ref[...] - m_new)
                      + jnp.sum(jnp.exp(logits - m_new), axis=-1,
                                keepdims=True))
        m_ref[...] = m_new
        logits_ref[...] = logits.astype(logits_ref.dtype)

    @pl.when(jnp.logical_and(last_k, j == pl.num_programs(1) - 1))
    def _():
        lse_ref[...] = m_ref[...] + jnp.log(l_ref[...])


def _normalize_kernel(logits_ref, lse_ref, o_ref):
    o_ref[...] = logits_ref[...].astype(jnp.float32) - lse_ref[...]


# ---------------------------------------------------------------------------
# Wrapper
# ---------------------------------------------------------------------------

def generator_forward(x, wt_packed, bias2d, *, tm=256, tk=None, v_tile=None):
    """y = log_softmax(x @ W^T + b, axis=-1) via fused Pallas kernels.

    x:         (..., D)    activations (any float dtype; streamed as bf16)
    wt_packed: (D, V)      pre-packed weight (see pack_generator_params)
    bias2d:    (1, V) f32  pre-packed bias
    Returns    (..., V) f32 log-probabilities.
    """
    orig_lead = x.shape[:-1]
    D = x.shape[-1]
    Dw, V = wt_packed.shape
    assert Dw == D and bias2d.shape == (1, V)

    xf = jnp.asarray(x).reshape(-1, D)
    N = xf.shape[0]
    budget = _vmem_budget_bytes()

    # ---- row tiling: big tiles amortize the weight re-stream -------------
    tm = int(min(tm, max(8, _round_up(N, 8))))
    Np = _round_up(N, tm)
    # Keep >= 2 row tiles when the batch allows so v7x's second TensorCore
    # (megacore "parallel" axis) has work.
    if Np // tm < 2 and N > 8:
        tm = max(8, _round_up(_round_up(N, 8) // 2, 8))
        Np = _round_up(N, tm)

    # ---- contraction tiling: take all of D when it fits ------------------
    Dp = _round_up(D, 128)
    if tk is None:
        tk = Dp if Dp <= 4096 else 2048
    tk = min(int(tk), Dp)
    tk = max(128, (tk // 128) * 128)
    while Dp % tk != 0:
        tk -= 128
    kt = Dp // tk

    # ---- pad activations, cast streams to bf16 ----------------------------
    xpad = xf
    if Np != N or Dp != D:
        xpad = jnp.zeros((Np, Dp), xf.dtype).at[:N, :D].set(xf)
    x_bf16 = xpad.astype(jnp.bfloat16)

    wt = wt_packed.astype(jnp.bfloat16)
    if Dp != D:
        wt = jnp.zeros((Dp, V), wt.dtype).at[:D, :].set(wt)
    b = bias2d

    # ---- choose fused vs V-tiled path -------------------------------------
    def _fused_vmem(tm_, tk_, v_):
        return (2 * tm_ * tk_ * 2        # double-buffered bf16 x tile
                + 2 * tk_ * v_ * 2       # double-buffered bf16 weight tile
                + 2 * v_ * 4             # bias
                + 2 * tm_ * v_ * 4)      # f32 output/accumulator block

    if v_tile is not None:
        use_tiled = v_tile < V
    else:
        use_tiled = _fused_vmem(tm, tk, V) > int(0.7 * budget)
        if use_tiled:
            v_tile = 2048

    if not use_tiled:
        grid = (Np // tm, kt)
        out = pl.pallas_call(
            _fused_kernel,
            out_shape=jax.ShapeDtypeStruct((Np, V), jnp.float32),
            grid_spec=pltpu.PrefetchScalarGridSpec(
                num_scalar_prefetch=0,
                grid=grid,
                in_specs=[
                    pl.BlockSpec((tm, tk), lambda i, k: (i, k)),  # x tile
                    pl.BlockSpec((tk, V), lambda i, k: (k, 0)),   # W^T tile
                    pl.BlockSpec((1, V), lambda i, k: (0, 0)),    # bias
                ],
                out_specs=pl.BlockSpec((tm, V), lambda i, k: (i, 0)),
            ),
            compiler_params=pltpu.CompilerParams(
                dimension_semantics=("parallel", "arbitrary"),
                vmem_limit_bytes=budget,
            ),
            cost_estimate=pl.CostEstimate(
                flops=2 * Np * Dp * V,
                transcendentals=Np * V,
                # weight is re-streamed once per row tile
                bytes_accessed=(Np * Dp * 2 + (Np // tm) * Dp * V * 2
                                + V * 4 + Np * V * 4),
            ),
        )(x_bf16, wt, b)
        out = out[:N]
    else:
        tv = max(128, (min(int(v_tile), V) // 128) * 128)
        Vp = _round_up(V, tv)
        if Vp != V:
            wt = jnp.concatenate(
                [wt, jnp.zeros((Dp, Vp - V), wt.dtype)], axis=1)
            b = jnp.concatenate(
                [b, jnp.full((1, Vp - V), _NEG_BIG, b.dtype)], axis=1)

        grid1 = (Np // tm, Vp // tv, kt)
        logits, lse = pl.pallas_call(
            _logits_lse_kernel,
            out_shape=(jax.ShapeDtypeStruct((Np, Vp), jnp.bfloat16),
                       jax.ShapeDtypeStruct((Np, 1), jnp.float32)),
            grid_spec=pltpu.PrefetchScalarGridSpec(
                num_scalar_prefetch=0,
                grid=grid1,
                in_specs=[
                    pl.BlockSpec((tm, tk), lambda i, j, k: (i, k)),
                    pl.BlockSpec((tk, tv), lambda i, j, k: (k, j)),
                    pl.BlockSpec((1, tv), lambda i, j, k: (0, j)),
                ],
                out_specs=[
                    pl.BlockSpec((tm, tv), lambda i, j, k: (i, j)),
                    pl.BlockSpec((tm, 1), lambda i, j, k: (i, 0)),
                ],
                scratch_shapes=[
                    pltpu.VMEM((tm, tv), jnp.float32),   # f32 logits acc
                    pltpu.VMEM((tm, 1), jnp.float32),    # running max
                    pltpu.VMEM((tm, 1), jnp.float32),    # running sum
                ],
            ),
            compiler_params=pltpu.CompilerParams(
                dimension_semantics=("parallel", "arbitrary", "arbitrary"),
                vmem_limit_bytes=budget,
            ),
            cost_estimate=pl.CostEstimate(
                flops=2 * Np * Dp * Vp,
                transcendentals=Np * Vp,
                bytes_accessed=((Vp // tv) * Np * Dp * 2
                                + (Np // tm) * Dp * Vp * 2
                                + Vp * 4 + Np * Vp * 2 + Np * 4),
            ),
        )(x_bf16, wt, b)

        grid2 = (Np // tm, Vp // tv)
        out = pl.pallas_call(
            _normalize_kernel,
            out_shape=jax.ShapeDtypeStruct((Np, Vp), jnp.float32),
            grid_spec=pltpu.PrefetchScalarGridSpec(
                num_scalar_prefetch=0,
                grid=grid2,
                in_specs=[
                    pl.BlockSpec((tm, tv), lambda i, j: (i, j)),
                    pl.BlockSpec((tm, 1), lambda i, j: (i, 0)),
                ],
                out_specs=pl.BlockSpec((tm, tv), lambda i, j: (i, j)),
            ),
            compiler_params=pltpu.CompilerParams(
                dimension_semantics=("parallel", "parallel"),
                vmem_limit_bytes=budget,
            ),
            cost_estimate=pl.CostEstimate(
                flops=Np * Vp,
                transcendentals=0,
                bytes_accessed=Np * Vp * 2 + Np * 4 + Np * Vp * 4,
            ),
        )(logits, lse)
        out = out[:N, :V]

    return out.reshape(*orig_lead, V)


def _reference_forward(x, weight, bias):
    logits = jnp.einsum("...d,vd->...v", x, weight) + bias
    return jax.nn.log_softmax(logits, axis=-1)


if __name__ == "__main__":
    batch, seq = 2, 8
    dimen_model = 256        # D
    dimen_vocab = 512        # V

    key = jax.random.PRNGKey(0)
    kx, kw, kb = jax.random.split(key, 3)

    x = jax.random.normal(kx, (batch, seq, dimen_model), dtype=jnp.float32)
    scale = 1.0 / jnp.sqrt(dimen_model)
    weight = jax.random.uniform(
        kw, (dimen_vocab, dimen_model), jnp.float32, -scale, scale)
    bias = jax.random.uniform(kb, (dimen_vocab,), jnp.float32, -scale, scale)

    # One-time parameter packing (transpose + bf16), amortized across calls.
    wt_packed, bias2d = pack_generator_params(weight, bias)

    # f32 reference (PyTorch semantics) and a bf16-input-matched reference.
    ref_f32 = _reference_forward(x, weight, bias)
    xb = x.astype(jnp.bfloat16).astype(jnp.float32)
    wb = weight.astype(jnp.bfloat16).astype(jnp.float32)
    ref_matched = jax.nn.log_softmax(
        jnp.einsum("...d,vd->...v", xb, wb,
                   precision=jax.lax.Precision.HIGHEST) + bias, axis=-1)

    # (name, output, matched-tolerance). The V-tiled path stores bf16 logits
    # between passes, so its matched tolerance is looser.
    variants = [
        ("fused_auto",
         generator_forward(x, wt_packed, bias2d), 2e-3),
        ("fused_k_tiled",
         generator_forward(x, wt_packed, bias2d, tk=128), 2e-3),
        ("v_tiled_two_pass",
         generator_forward(x, wt_packed, bias2d, tk=128, v_tile=128), 3e-2),
    ]

    for name, y, tol_matched in variants:
        y = jax.block_until_ready(y)
        assert y.shape == (batch, seq, dimen_vocab), (name, y.shape)
        err_matched = float(jnp.max(jnp.abs(y - ref_matched)))
        err_f32 = float(jnp.max(jnp.abs(y - ref_f32)))
        assert err_matched < tol_matched, (name, err_matched)
        assert err_f32 < 7.5e-2, (name, err_f32)

    print("KERNEL_OK")
</pallas_src>

<mosaic_0001>
module attributes {stable_mosaic.version = 11 : i64} {
  func.func @_fused_kernel(%arg0: i32, %arg1: i32, %arg2: memref<8x256xbf16, #tpu.memory_space<vmem>>, %arg3: memref<256x512xbf16, #tpu.memory_space<vmem>>, %arg4: memref<1x512xf32, #tpu.memory_space<vmem>>, %arg5: memref<8x512xf32, #tpu.memory_space<vmem>>) attributes {dimension_semantics = [#tpu.dimension_semantics<parallel>, #tpu.dimension_semantics<arbitrary>], iteration_bounds = array<i64: 2, 1>, scalar_prefetch = 0 : i64, scratch_operands = 0 : i64, tpu.core_type = #tpu.core_type<tc>, window_params = [{transform_indices = @transform_0, window_bounds = array<i64: 8, 256>}, {transform_indices = @transform_1, window_bounds = array<i64: 256, 512>}, {pipeline_mode = #tpu.pipeline_mode<synchronous>, transform_indices = @transform_2, window_bounds = array<i64: 1, 512>}, {transform_indices = @transform_3, window_bounds = array<i64: 8, 512>}]} {
    %c0_i32 = arith.constant 0 : i32
    %0 = arith.cmpi eq, %arg1, %c0_i32 : i32
    %1 = arith.extui %0 : i1 to i32
    %c0_i32_0 = arith.constant 0 : i32
    %2 = arith.cmpi ne, %1, %c0_i32_0 : i32
    scf.if %2 {
      %c0_10 = arith.constant 0 : index
      %c0_11 = arith.constant 0 : index
      %12 = vector.load %arg4[%c0_10, %c0_11] : memref<1x512xf32, #tpu.memory_space<vmem>>, vector<1x512xf32>
      %13 = vector.shape_cast %12 : vector<1x512xf32> to vector<1x512xf32>
      %14 = vector.broadcast %13 : vector<1x512xf32> to vector<8x512xf32>
      %c0_12 = arith.constant 0 : index
      %c0_13 = arith.constant 0 : index
      %15 = vector.load %arg5[%c0_12, %c0_13] : memref<8x512xf32, #tpu.memory_space<vmem>>, vector<8x512xf32>
      tpu.vector_store %arg5[%c0_12, %c0_13], %14 {strides = array<i32>} : memref<8x512xf32, #tpu.memory_space<vmem>>, vector<8x512xf32>,
    } else {
    }
    %c0 = arith.constant 0 : index
    %c0_1 = arith.constant 0 : index
    %3 = vector.load %arg5[%c0, %c0_1] : memref<8x512xf32, #tpu.memory_space<vmem>>, vector<8x512xf32>
    %c0_2 = arith.constant 0 : index
    %c0_3 = arith.constant 0 : index
    %4 = vector.load %arg2[%c0_2, %c0_3] : memref<8x256xbf16, #tpu.memory_space<vmem>>, vector<8x256xbf16>
    %c0_4 = arith.constant 0 : index
    %c0_5 = arith.constant 0 : index
    %5 = vector.load %arg3[%c0_4, %c0_5] : memref<256x512xbf16, #tpu.memory_space<vmem>>, vector<256x512xbf16>
    %cst = arith.constant dense<0.000000e+00> : vector<8x512xf32>
    %6 = tpu.matmul %4, %5, %cst {dimension_numbers = #tpu.dot_dimension_numbers<[1], [0], [0], [1], [0, 0, 1, 1], [], []>} : vector<8x256xbf16>, vector<256x512xbf16>, vector<8x512xf32> -> vector<8x512xf32>
    %7 = arith.addf %3, %6 : vector<8x512xf32>
    %c0_6 = arith.constant 0 : index
    %c0_7 = arith.constant 0 : index
    %8 = vector.load %arg5[%c0_6, %c0_7] : memref<8x512xf32, #tpu.memory_space<vmem>>, vector<8x512xf32>
    tpu.vector_store %arg5[%c0_6, %c0_7], %7 {strides = array<i32>} : memref<8x512xf32, #tpu.memory_space<vmem>>, vector<8x512xf32>,
    %c0_i32_8 = arith.constant 0 : i32
    %9 = arith.cmpi eq, %arg1, %c0_i32_8 : i32
    %10 = arith.extui %9 : i1 to i32
    %c0_i32_9 = arith.constant 0 : i32
    %11 = arith.cmpi ne, %10, %c0_i32_9 : i32
    scf.if %11 {
      %c0_10 = arith.constant 0 : index
      %c0_11 = arith.constant 0 : index
      %12 = vector.load %arg5[%c0_10, %c0_11] : memref<8x512xf32, #tpu.memory_space<vmem>>, vector<8x512xf32>
      %cst_12 = arith.constant dense<0xFF800000> : vector<8xf32>
      %13 = vector.multi_reduction <maximumf>, %12, %cst_12 [1] : vector<8x512xf32> to vector<8xf32>
      %14 = vector.shape_cast %13 : vector<8xf32> to vector<8x1xf32>
      %c0_13 = arith.constant 0 : index
      %c0_14 = arith.constant 0 : index
      %15 = vector.load %arg5[%c0_13, %c0_14] : memref<8x512xf32, #tpu.memory_space<vmem>>, vector<8x512xf32>
      %16 = vector.broadcast %14 : vector<8x1xf32> to vector<8x512xf32>
      %17 = arith.subf %15, %16 : vector<8x512xf32>
      %c0_15 = arith.constant 0 : index
      %c0_16 = arith.constant 0 : index
      %18 = vector.load %arg5[%c0_15, %c0_16] : memref<8x512xf32, #tpu.memory_space<vmem>>, vector<8x512xf32>
      tpu.vector_store %arg5[%c0_15, %c0_16], %17 {strides = array<i32>} : memref<8x512xf32, #tpu.memory_space<vmem>>, vector<8x512xf32>,
      %c0_17 = arith.constant 0 : index
      %c0_18 = arith.constant 0 : index
      %19 = vector.load %arg5[%c0_17, %c0_18] : memref<8x512xf32, #tpu.memory_space<vmem>>, vector<8x512xf32>
      %20 = math.exp %19 : vector<8x512xf32>
      %cst_19 = arith.constant dense<0.000000e+00> : vector<8xf32>
      %21 = vector.multi_reduction <add>, %20, %cst_19 [1] : vector<8x512xf32> to vector<8xf32>
      %22 = vector.shape_cast %21 : vector<8xf32> to vector<8x1xf32>
      %23 = math.log %22 : vector<8x1xf32>
      %c0_20 = arith.constant 0 : index
      %c0_21 = arith.constant 0 : index
      %24 = vector.load %arg5[%c0_20, %c0_21] : memref<8x512xf32, #tpu.memory_space<vmem>>, vector<8x512xf32>
      %25 = vector.broadcast %23 : vector<8x1xf32> to vector<8x512xf32>
      %26 = arith.subf %24, %25 : vector<8x512xf32>
      %c0_22 = arith.constant 0 : index
      %c0_23 = arith.constant 0 : index
      %27 = vector.load %arg5[%c0_22, %c0_23] : memref<8x512xf32, #tpu.memory_space<vmem>>, vector<8x512xf32>
      tpu.vector_store %arg5[%c0_22, %c0_23], %26 {strides = array<i32>} : memref<8x512xf32, #tpu.memory_space<vmem>>, vector<8x512xf32>,
    } else {
    }
    return
  }
  func.func @transform_0(%arg0: i32, %arg1: i32) -> (i32, i32) {
    %c0_i32 = arith.constant 0 : i32
    return %arg0, %arg1 : i32, i32
  }
  func.func @transform_1(%arg0: i32, %arg1: i32) -> (i32, i32) {
    %c0_i32 = arith.constant 0 : i32
    %c0_i32_0 = arith.constant 0 : i32
    return %arg1, %c0_i32 : i32, i32
  }
  func.func @transform_2(%arg0: i32, %arg1: i32) -> (i32, i32) {
    %c0_i32 = arith.constant 0 : i32
    %c0_i32_0 = arith.constant 0 : i32
    %c0_i32_1 = arith.constant 0 : i32
    return %c0_i32, %c0_i32_0 : i32, i32
  }
  func.func @transform_3(%arg0: i32, %arg1: i32) -> (i32, i32) {
    %c0_i32 = arith.constant 0 : i32
    %c0_i32_0 = arith.constant 0 : i32
    return %arg0, %c0_i32 : i32, i32
  }
}

</mosaic_0001>

<llo_original>
// kernel: tpu_custom_call.1
$region0: #{tpu_custom_call.1}
  #allocation0 [shape = 'u32[]', space=smem, size = 0x4, offset = 0x4, fixed_abs, tag = 'smem constant byte address 0x4 - core index']
  #allocation1 [shape = 'u32[144,128]{1,0:T(1,128)}', space=vmem, size = 0x12000, scoped, tag = 'internal scratch']
  %s0 = inlined_call_operand.hbm [shape: bf16[16,256], index: 0, kind: input, shape index: {}]
  %s1 = inlined_call_operand.hbm [shape: bf16[256,512], index: 1, kind: input, shape index: {}]
  %s2 = inlined_call_operand.hbm [shape: f32[1,512], index: 2, kind: input, shape index: {}]
  %s3 = inlined_call_operand.hbm [shape: f32[16,512], index: 3, kind: output, shape index: {}]
  %s4 = sld [smem:[#allocation0]]
  $region65: #{tpu_custom_call.1} parent=0
    _
  %s6 = ssub.s32 1, %s4
  %s7 = scalar_select 0, %s6, %s4
  $region1: #{tpu_custom_call.1} parent=0
    #allocation2 [shape = 'u8[8192]{0}', space=vmem, size = 0x2000, scoped, tag = 'input window, operand 0']
    #allocation3 [shape = 's32[2]{0}', space=sflag, size = 0x8, scoped, tag = 'scoped memory for tpu_custom_call.1']
    #allocation4 [shape = 's32[2]{0}', space=sflag, size = 0x8, scoped, tag = 'scoped memory for tpu_custom_call.1']
    #allocation5 [shape = 'u8[262144]{0}', space=vmem, size = 0x40000, scoped, tag = 'input window, operand 1, single buffered']
    #allocation6 [shape = 's32[1]{0}', space=sflag, size = 0x4, scoped, tag = 'scoped memory for tpu_custom_call.1']
    #allocation7 [shape = 'u8[2048]{0}', space=vmem, size = 0x800, scoped, tag = 'input window, operand 2, single buffered']
    #allocation8 [shape = 'u8[32768]{0}', space=vmem, size = 0x8000, scoped, tag = 'output window, operand 0']
    %8 = vsyncpa [#allocation3], 0
    %s9 = scalar_lea.sflag [#allocation3], 1
    %10 = vsyncpa %s9, 0
    %11 = vsyncpa [#allocation6], 0
    %12 = vsyncpa [#allocation4], 0
    %s13 = scalar_lea.sflag [#allocation4], 1
    %14 = vsyncpa %s13, 0
    loop: start=0, step=1, limit=4
    $region2: #{tpu_custom_call.1} parent=1 // loop_pre_header
      _
    $region3: #{tpu_custom_call.1} parent=1 // loop_header
      %s16 = sphi 0, %s20
      %p17 = scmp.ge.s32.totalorder %s16, 4
      %s23 = sphi 0, %s35
      %s24 = sphi 0, %s31
      %s25 = sphi 0, %s23
      %s26 = sphi 0, %s24
      %s27 = sphi 0, %s25
      %s28 = sphi 0, %s26
      %s40 = sphi 0, %s42
      %s43 = sphi 0, %s40
      %s44 = sphi 0, %s43
      %s60 = sphi 0, %s44
      %s66 = sphi 0, %s68
      %s69 = sphi 0, %s66
      %s70 = sphi 0, %s69
      %s86 = sphi 0, %s70
      %s90 = sphi 0, %s90
      %s92 = sphi 0, %s90
      %s93 = sphi 0, %s92
      %s107 = sphi 0, %s93
      %s113 = sphi 0, %s115
      %s116 = sphi 0, %s113
      %s117 = sphi 0, %s116
      %s133 = sphi 0, %s117
    $region4: #{tpu_custom_call.1} parent=1 // loop_header_branch
      %19 = sbr.rel (%p17) target = $region8
    $region5: #{tpu_custom_call.1} parent=1 // loop_body
      %s21 = ssub.s32 %s16, 1
      %s22 = ssub.s32 %s16, 2
      %s29 = sadd.s32 1, %s24
      %p30 = scmp.ge.s32.totalorder %s29, 1
      %s31 = scalar_select %p30, 0, %s29
      %s32 = sadd.s32 1, %s23
      %s33 = scalar_select %p30, %s32, %s23
      %p34 = scmp.ge.s32.totalorder %s33, 2
      %s35 = scalar_select %p34, 0, %s33
      %s36 = ssub.s32 %s23, %s35
      %s37 = ssub.s32 %s24, %s31
      %s38 = sor.u32 %s36, %s37
      %p39 = scmp.eq.s32.totalorder %s38, 0
      %s41 = sadd.s32 %s40, 1
      %s42 = scalar_select %p39, %s40, %s41
      %p45 = pneg %p39
      %p46 = scmp.eq.s32.totalorder %s16, 1
      %p47 = por %p45, %p46
      %p48 = scmp.ne.s32.totalorder %s40, %s43
      %p49 = scmp.eq.s32.totalorder %s16, 0
      %p50 = por %p48, %p49
      %p51 = scmp.ne.s32.totalorder %s40, %s43
      %p52 = scmp.eq.s32.totalorder %s21, 1
      %p53 = por %p51, %p52
      %p54 = scmp.ne.s32.totalorder %s43, %s44
      %p55 = scmp.eq.s32.totalorder %s21, 0
      %p56 = por %p54, %p55
      %p57 = scmp.ne.s32.totalorder %s43, %s44
      %p58 = scmp.eq.s32.totalorder %s22, 1
      %p59 = por %p57, %p58
      %p61 = scmp.ne.s32.totalorder %s44, %s60
      %p62 = scmp.eq.s32.totalorder %s22, 0
      %p63 = por %p61, %p62
      %s64 = ssub.s32 %s24, %s31
      %p65 = scmp.eq.s32.totalorder %s64, 0
      %s67 = sadd.s32 %s66, 1
      %s68 = scalar_select %p65, %s66, %s67
      %p71 = pneg %p65
      %p72 = scmp.eq.s32.totalorder %s16, 1
      %p73 = por %p71, %p72
      %p74 = scmp.ne.s32.totalorder %s66, %s69
      %p75 = scmp.eq.s32.totalorder %s16, 0
      %p76 = por %p74, %p75
      %p77 = scmp.ne.s32.totalorder %s66, %s69
      %p78 = scmp.eq.s32.totalorder %s21, 1
      %p79 = por %p77, %p78
      %p80 = scmp.ne.s32.totalorder %s69, %s70
      %p81 = scmp.eq.s32.totalorder %s21, 0
      %p82 = por %p80, %p81
      %p83 = scmp.ne.s32.totalorder %s69, %s70
      %p84 = scmp.eq.s32.totalorder %s22, 1
      %p85 = por %p83, %p84
      %p87 = scmp.ne.s32.totalorder %s70, %s86
      %p88 = scmp.eq.s32.totalorder %s22, 0
      %p89 = por %p87, %p88
      %s91 = sadd.s32 %s90, 1
      %p94 = scmp.eq.s32.totalorder %s16, 1
      %p95 = scmp.ne.s32.totalorder %s90, %s92
      %p96 = scmp.eq.s32.totalorder %s16, 0
      %p97 = por %p95, %p96
      %p98 = scmp.ne.s32.totalorder %s90, %s92
      %p99 = scmp.eq.s32.totalorder %s21, 1
      %p100 = por %p98, %p99
      %p101 = scmp.ne.s32.totalorder %s92, %s93
      %p102 = scmp.eq.s32.totalorder %s21, 0
      %p103 = por %p101, %p102
      %p104 = scmp.ne.s32.totalorder %s92, %s93
      %p105 = scmp.eq.s32.totalorder %s22, 1
      %p106 = por %p104, %p105
      %p108 = scmp.ne.s32.totalorder %s93, %s107
      %p109 = scmp.eq.s32.totalorder %s22, 0
      %p110 = por %p108, %p109
      %s111 = ssub.s32 %s23, %s35
      %p112 = scmp.eq.s32.totalorder %s111, 0
      %s114 = sadd.s32 %s113, 1
      %s115 = scalar_select %p112, %s113, %s114
      %p118 = pneg %p112
      %p119 = scmp.eq.s32.totalorder %s16, 1
      %p120 = por %p118, %p119
      %p121 = scmp.ne.s32.totalorder %s113, %s116
      %p122 = scmp.eq.s32.totalorder %s16, 0
      %p123 = por %p121, %p122
      %p124 = scmp.ne.s32.totalorder %s113, %s116
      %p125 = scmp.eq.s32.totalorder %s21, 1
      %p126 = por %p124, %p125
      %p127 = scmp.ne.s32.totalorder %s116, %s117
      %p128 = scmp.eq.s32.totalorder %s21, 0
      %p129 = por %p127, %p128
      %p130 = scmp.ne.s32.totalorder %s116, %s117
      %p131 = scmp.eq.s32.totalorder %s22, 1
      %p132 = por %p130, %p131
      %p134 = scmp.ne.s32.totalorder %s117, %s133
      %p135 = scmp.eq.s32.totalorder %s22, 0
      %p136 = por %p134, %p135
      %p137 = scmp.le.s32.totalorder 1, %s16
      %p138 = scmp.lt.s32.totalorder %s16, 3
      %p139 = pnand %p137, %p138
      %p140 = pneg %p139
      // Predicated region
      $region9: #{tpu_custom_call.1} parent=5 // pred_check
        _
      $region10: #{tpu_custom_call.1} parent=5 // pred_check_branch
        %142 = sbr.rel (%p139) target = $region12
      $region11: #{tpu_custom_call.1} parent=5 // pred_region
        %s143 = ssub.s32 %s16, 1
        // Predicated region
        $region13: #{tpu_custom_call.1} parent=11 // pred_check
          %p144 = pneg %p82
        $region14: #{tpu_custom_call.1} parent=11 // pred_check_branch
          %146 = sbr.rel (%p144) target = $region16
        $region15: #{tpu_custom_call.1} parent=11 // pred_region
          %s147 = smul.u32 32, %s26
          %s149 = ssub.s32 8192, 8192
          %150 = vsyncadd [#allocation6], %s149
          %s151 = smul.addr %s147, 4
          %s152 = smul.addr %s151, 64
          %s153 = scalar_lea.hbm %s1, %s152
          %s154 = sshll.u32 [#allocation5], 4
          %s155 = int_to_ptr.vmem [resolvable:$true] %s154
          %160 = dma.hbm_to_vmem [thread:$0]  %s153, 8192, %s155, [#allocation6], 256, 256, 16
        $region16: #{tpu_custom_call.1} parent=11 // pred_fallthru
          _
        // Predicated region
        $region17: #{tpu_custom_call.1} parent=11 // pred_check
          %p161 = pneg %p103
        $region18: #{tpu_custom_call.1} parent=11 // pred_check_branch
          %163 = sbr.rel (%p161) target = $region20
        $region19: #{tpu_custom_call.1} parent=11 // pred_region
          %s165 = ssub.s32 64, 64
          %166 = vsyncadd [#allocation6], %s165
          %s168 = sshll.u32 [#allocation7], 4
          %s169 = int_to_ptr.vmem [resolvable:$true] %s168
          %171 = dma.hbm_to_vmem [thread:$0]  %s2, 64, %s169, [#allocation6]
        $region20: #{tpu_custom_call.1} parent=11 // pred_fallthru
          _
      $region12: #{tpu_custom_call.1} parent=5 // pred_fallthru
        _
      %p172 = scmp.lt.s32.totalorder %s16, 2
      // Predicated region
      $region21: #{tpu_custom_call.1} parent=5 // pred_check
        %p173 = pneg %p172
      $region22: #{tpu_custom_call.1} parent=5 // pred_check_branch
        %175 = sbr.rel (%p173) target = $region24
      $region23: #{tpu_custom_call.1} parent=5 // pred_region
        // Predicated region
        $region25: #{tpu_custom_call.1} parent=23 // pred_check
          %p176 = pneg %p50
        $region26: #{tpu_custom_call.1} parent=23 // pred_check_branch
          %178 = sbr.rel (%p176) target = $region28
        $region27: #{tpu_custom_call.1} parent=23 // pred_region
          %s179 = sand.u32 %s40, 1
          %s180 = scalar_lea.sflag [#allocation3], %s179
          %s181 = sand.u32 %s40, 1
          %s182 = smul.addr %s181, 8
          %s183 = scalar_lea.vmem [#allocation2], %s182
          %s184 = smul.u32 2, %s24
          %s186 = ssub.s32 128, 128
          %187 = vsyncadd %s180, %s186
          %s188 = smul.addr %s23, 2
          %s189 = sadd.s32 %s184, %s188
          %s190 = smul.addr %s189, 64
          %s191 = scalar_lea.hbm %s0, %s190
          %s193 = sshll.u32 %s183, 4
          %s194 = int_to_ptr.vmem [resolvable:$true] %s193
          %196 = dma.hbm_to_vmem [thread:$0]  %s191, 128, %s194, %s180
        $region28: #{tpu_custom_call.1} parent=23 // pred_fallthru
          _
      $region24: #{tpu_custom_call.1} parent=5 // pred_fallthru
        _
      %p197 = scmp.le.s32.totalorder 1, %s16
      %p198 = scmp.lt.s32.totalorder %s16, 3
      %p199 = pnand %p197, %p198
      %p200 = pneg %p199
      // Predicated region
      $region29: #{tpu_custom_call.1} parent=5 // pred_check
        _
      $region30: #{tpu_custom_call.1} parent=5 // pred_check_branch
        %202 = sbr.rel (%p199) target = $region32
      $region31: #{tpu_custom_call.1} parent=5 // pred_region
        %s203 = ssub.s32 %s16, 1
        %s204 = sand.u32 %s43, 1
        %s205 = scalar_lea.sflag [#allocation3], %s204
        %s206 = sand.u32 %s43, 1
        %s207 = smul.addr %s206, 8
        %s208 = scalar_lea.vmem [#allocation2], %s207
        // Predicated region
        $region33: #{tpu_custom_call.1} parent=31 // pred_check
          %p209 = pneg %p56
        $region34: #{tpu_custom_call.1} parent=31 // pred_check_branch
          %211 = sbr.rel (%p209) target = $region36
        $region35: #{tpu_custom_call.1} parent=31 // pred_region
          %212 = dma.done %s205, 128
        $region36: #{tpu_custom_call.1} parent=31 // pred_fallthru
          _
        // Predicated region
        $region37: #{tpu_custom_call.1} parent=31 // pred_check
          %p213 = pneg %p82
        $region38: #{tpu_custom_call.1} parent=31 // pred_check_branch
          %215 = sbr.rel (%p213) target = $region40
        $region39: #{tpu_custom_call.1} parent=31 // pred_region
          %216 = dma.done [#allocation6], 8192
        $region40: #{tpu_custom_call.1} parent=31 // pred_fallthru
          _
        // Predicated region
        $region41: #{tpu_custom_call.1} parent=31 // pred_check
          %p217 = pneg %p103
        $region42: #{tpu_custom_call.1} parent=31 // pred_check_branch
          %219 = sbr.rel (%p217) target = $region44
        $region43: #{tpu_custom_call.1} parent=31 // pred_region
          %220 = dma.done [#allocation6], 64
        $region44: #{tpu_custom_call.1} parent=31 // pred_fallthru
          _
        %s221 = sand.u32 %s43, 1
        %s222 = scalar_lea.sflag [#allocation3], %s221
        %s223 = sand.u32 %s43, 1
        %s224 = smul.addr %s223, 8
        %s225 = scalar_lea.vmem [#allocation2], %s224
        %p226 = pneg %p56
        %p227 = pneg %p53
        %p228 = pneg %p82
        %p229 = pneg %p79
        %p230 = pneg %p103
        %p231 = pneg %p100
        %p232 = pneg %p129
        %p233 = pneg %p126
        %s234 = sand.u32 %s116, 1
        %s235 = scalar_lea.sflag [#allocation4], %s234
        %s236 = sand.u32 %s116, 1
        %s237 = smul.addr %s236, 32
        %s238 = scalar_lea.vmem [#allocation8], %s237
        %s239 = smul.u32 2, %s26
        %s240 = smul.u32 32, %s26
        %p241 = scmp.eq.s32.totalorder %s26, 0
        // Predicated region
        $region45: #{tpu_custom_call.1} parent=31 // pred_check
          %p242 = pneg %p241
        $region46: #{tpu_custom_call.1} parent=31 // pred_check_branch
          %244 = sbr.rel (%p242) target = $region48
        $region47: #{tpu_custom_call.1} parent=31 // pred_region
          %v245 = vld [vmem:[#allocation7] sm:$0xf]
          %v247 = vlaneseq
          %v248 = vshrl.u32 %v247, 7
          %v249 = vsub.s32 0, %v248
          %v250 = vrot.slane %v245, %v249
          %v251 = vlaneseq
          %v252 = vshrl.u32 %v251, 7
          %v253 = vsub.s32 1, %v252
          %v254 = vrot.slane %v245, %v253
          %v255 = vlaneseq
          %v256 = vshrl.u32 %v255, 7
          %v257 = vsub.s32 2, %v256
          %v258 = vrot.slane %v245, %v257
          %v259 = vlaneseq
          %v260 = vshrl.u32 %v259, 7
          %v261 = vsub.s32 3, %v260
          %v262 = vrot.slane %v245, %v261
          %267 = vst [vmem:[%s238] sm:$0xff] %v250
          %268 = vst [vmem:[%s238 + $0x8] sm:$0xff] %v254
          %269 = vst [vmem:[%s238 + $0x10] sm:$0xff] %v258
          %270 = vst [vmem:[%s238 + $0x18] sm:$0xff] %v262
        $region48: #{tpu_custom_call.1} parent=31 // pred_fallthru
          _
        %v271 = vld [vmem:[%s238] sm:$0xff]
        %v272 = vld [vmem:[%s238 + $0x8] sm:$0xff]
        %v273 = vld [vmem:[%s238 + $0x10] sm:$0xff]
        %v274 = vld [vmem:[%s238 + $0x18] sm:$0xff]
        %v275 = vld [vmem:[%s208] sm:$0xff]
        %v276 = vld [vmem:[#allocation5] sm:$0xff]
        %v277 = vld [vmem:[#allocation5 + $0x8] sm:$0xff]
        %v278 = vld [vmem:[#allocation5 + $0x10] sm:$0xff]
        %v279 = vld [vmem:[#allocation5 + $0x18] sm:$0xff]
        %v280 = vld [vmem:[#allocation5 + $0x20] sm:$0xff]
        %v281 = vld [vmem:[#allocation5 + $0x28] sm:$0xff]
        %v282 = vld [vmem:[#allocation5 + $0x30] sm:$0xff]
        %v283 = vld [vmem:[#allocation5 + $0x38] sm:$0xff]
        %v284 = vld [vmem:[#allocation5 + $0x40] sm:$0xff]
        %v285 = vld [vmem:[#allocation5 + $0x48] sm:$0xff]
        %v286 = vld [vmem:[#allocation5 + $0x50] sm:$0xff]
        %v287 = vld [vmem:[#allocation5 + $0x58] sm:$0xff]
        %v288 = vld [vmem:[#allocation5 + $0x60] sm:$0xff]
        %v289 = vld [vmem:[#allocation5 + $0x68] sm:$0xff]
        %v290 = vld [vmem:[#allocation5 + $0x70] sm:$0xff]
        %v291 = vld [vmem:[#allocation5 + $0x78] sm:$0xff]
        %v292 = vld [vmem:[#allocation5 + $0x80] sm:$0xff]
        %v293 = vld [vmem:[#allocation5 + $0x88] sm:$0xff]
        %v294 = vld [vmem:[#allocation5 + $0x90] sm:$0xff]
        %v295 = vld [vmem:[#allocation5 + $0x98] sm:$0xff]
        %v296 = vld [vmem:[#allocation5 + $0xa0] sm:$0xff]
        %v297 = vld [vmem:[#allocation5 + $0xa8] sm:$0xff]
        %v298 = vld [vmem:[#allocation5 + $0xb0] sm:$0xff]
        %v299 = vld [vmem:[#allocation5 + $0xb8] sm:$0xff]
        %v300 = vld [vmem:[#allocation5 + $0xc0] sm:$0xff]
        %v301 = vld [vmem:[#allocation5 + $0xc8] sm:$0xff]
        %v302 = vld [vmem:[#allocation5 + $0xd0] sm:$0xff]
        %v303 = vld [vmem:[#allocation5 + $0xd8] sm:$0xff]
        %v304 = vld [vmem:[#allocation5 + $0xe0] sm:$0xff]
        %v305 = vld [vmem:[#allocation5 + $0xe8] sm:$0xff]
        %v306 = vld [vmem:[#allocation5 + $0xf0] sm:$0xff]
        %v307 = vld [vmem:[#allocation5 + $0xf8] sm:$0xff]
        %v308 = vld [vmem:[#allocation5 + $0x100] sm:$0xff]
        %v309 = vld [vmem:[#allocation5 + $0x108] sm:$0xff]
        %v310 = vld [vmem:[#allocation5 + $0x110] sm:$0xff]
        %v311 = vld [vmem:[#allocation5 + $0x118] sm:$0xff]
        %v312 = vld [vmem:[#allocation5 + $0x120] sm:$0xff]
        %v313 = vld [vmem:[#allocation5 + $0x128] sm:$0xff]
        %v314 = vld [vmem:[#allocation5 + $0x130] sm:$0xff]
        %v315 = vld [vmem:[#allocation5 + $0x138] sm:$0xff]
        %v316 = vld [vmem:[#allocation5 + $0x140] sm:$0xff]
        %v317 = vld [vmem:[#allocation5 + $0x148] sm:$0xff]
        %v318 = vld [vmem:[#allocation5 + $0x150] sm:$0xff]
        %v319 = vld [vmem:[#allocation5 + $0x158] sm:$0xff]
        %v320 = vld [vmem:[#allocation5 + $0x160] sm:$0xff]
        %v321 = vld [vmem:[#allocation5 + $0x168] sm:$0xff]
        %v322 = vld [vmem:[#allocation5 + $0x170] sm:$0xff]
        %v323 = vld [vmem:[#allocation5 + $0x178] sm:$0xff]
        %v324 = vld [vmem:[#allocation5 + $0x180] sm:$0xff]
        %v325 = vld [vmem:[#allocation5 + $0x188] sm:$0xff]
        %v326 = vld [vmem:[#allocation5 + $0x190] sm:$0xff]
        %v327 = vld [vmem:[#allocation5 + $0x198] sm:$0xff]
        %v328 = vld [vmem:[#allocation5 + $0x1a0] sm:$0xff]
        %v329 = vld [vmem:[#allocation5 + $0x1a8] sm:$0xff]
        %v330 = vld [vmem:[#allocation5 + $0x1b0] sm:$0xff]
        %v331 = vld [vmem:[#allocation5 + $0x1b8] sm:$0xff]
        %v332 = vld [vmem:[#allocation5 + $0x1c0] sm:$0xff]
        %v333 = vld [vmem:[#allocation5 + $0x1c8] sm:$0xff]
        %v334 = vld [vmem:[#allocation5 + $0x1d0] sm:$0xff]
        %v335 = vld [vmem:[#allocation5 + $0x1d8] sm:$0xff]
        %v336 = vld [vmem:[#allocation5 + $0x1e0] sm:$0xff]
        %v337 = vld [vmem:[#allocation5 + $0x1e8] sm:$0xff]
        %v338 = vld [vmem:[#allocation5 + $0x1f0] sm:$0xff]
        %v339 = vld [vmem:[#allocation5 + $0x1f8] sm:$0xff]
        %v341 = vunpack.c.l.b16 %v275
        %v342 = vunpack.c.h.b16 %v275
        %v343 = vpack.c.b16 %v341, %v341
        %v344 = vpack.c.b16 %v342, %v342
        %v411 = vunpack.c.l.b16 %v276
        %v412 = vunpack.c.h.b16 %v276
        %v413 = vunpack.c.l.b16 %v277
        %v414 = vunpack.c.h.b16 %v277
        %v415 = vunpack.c.l.b16 %v278
        %v416 = vunpack.c.h.b16 %v278
        %v417 = vunpack.c.l.b16 %v279
        %v418 = vunpack.c.h.b16 %v279
        %v419 = vunpack.c.l.b16 %v280
        %v420 = vunpack.c.h.b16 %v280
        %v421 = vunpack.c.l.b16 %v281
        %v422 = vunpack.c.h.b16 %v281
        %v423 = vunpack.c.l.b16 %v282
        %v424 = vunpack.c.h.b16 %v282
        %v425 = vunpack.c.l.b16 %v283
        %v426 = vunpack.c.h.b16 %v283
        %v427 = vunpack.c.l.b16 %v284
        %v428 = vunpack.c.h.b16 %v284
        %v429 = vunpack.c.l.b16 %v285
        %v430 = vunpack.c.h.b16 %v285
        %v431 = vunpack.c.l.b16 %v286
        %v432 = vunpack.c.h.b16 %v286
        %v433 = vunpack.c.l.b16 %v287
        %v434 = vunpack.c.h.b16 %v287
        %v435 = vunpack.c.l.b16 %v288
        %v436 = vunpack.c.h.b16 %v288
        %v437 = vunpack.c.l.b16 %v289
        %v438 = vunpack.c.h.b16 %v289
        %v439 = vunpack.c.l.b16 %v290
        %v440 = vunpack.c.h.b16 %v290
        %v441 = vunpack.c.l.b16 %v291
        %v442 = vunpack.c.h.b16 %v291
        %v443 = vunpack.c.l.b16 %v292
        %v444 = vunpack.c.h.b16 %v292
        %v445 = vunpack.c.l.b16 %v293
        %v446 = vunpack.c.h.b16 %v293
        %v447 = vunpack.c.l.b16 %v294
        %v448 = vunpack.c.h.b16 %v294
        %v449 = vunpack.c.l.b16 %v295
        %v450 = vunpack.c.h.b16 %v295
        %v451 = vunpack.c.l.b16 %v296
        %v452 = vunpack.c.h.b16 %v296
        %v453 = vunpack.c.l.b16 %v297
        %v454 = vunpack.c.h.b16 %v297
        %v455 = vunpack.c.l.b16 %v298
        %v456 = vunpack.c.h.b16 %v298
        %v457 = vunpack.c.l.b16 %v299
        %v458 = vunpack.c.h.b16 %v299
        %v459 = vunpack.c.l.b16 %v300
        %v460 = vunpack.c.h.b16 %v300
        %v461 = vunpack.c.l.b16 %v301
        %v462 = vunpack.c.h.b16 %v301
        %v463 = vunpack.c.l.b16 %v302
        %v464 = vunpack.c.h.b16 %v302
        %v465 = vunpack.c.l.b16 %v303
        %v466 = vunpack.c.h.b16 %v303
        %v467 = vunpack.c.l.b16 %v304
        %v468 = vunpack.c.h.b16 %v304
        %v469 = vunpack.c.l.b16 %v305
        %v470 = vunpack.c.h.b16 %v305
        %v471 = vunpack.c.l.b16 %v306
        %v472 = vunpack.c.h.b16 %v306
        %v473 = vunpack.c.l.b16 %v307
        %v474 = vunpack.c.h.b16 %v307
        %v475 = vunpack.c.l.b16 %v308
        %v476 = vunpack.c.h.b16 %v308
        %v477 = vunpack.c.l.b16 %v309
        %v478 = vunpack.c.h.b16 %v309
        %v479 = vunpack.c.l.b16 %v310
        %v480 = vunpack.c.h.b16 %v310
        %v481 = vunpack.c.l.b16 %v311
        %v482 = vunpack.c.h.b16 %v311
        %v483 = vunpack.c.l.b16 %v312
        %v484 = vunpack.c.h.b16 %v312
        %v485 = vunpack.c.l.b16 %v313
        %v486 = vunpack.c.h.b16 %v313
        %v487 = vunpack.c.l.b16 %v314
        %v488 = vunpack.c.h.b16 %v314
        %v489 = vunpack.c.l.b16 %v315
        %v490 = vunpack.c.h.b16 %v315
        %v491 = vunpack.c.l.b16 %v316
        %v492 = vunpack.c.h.b16 %v316
        %v493 = vunpack.c.l.b16 %v317
        %v494 = vunpack.c.h.b16 %v317
        %v495 = vunpack.c.l.b16 %v318
        %v496 = vunpack.c.h.b16 %v318
        %v497 = vunpack.c.l.b16 %v319
        %v498 = vunpack.c.h.b16 %v319
        %v499 = vunpack.c.l.b16 %v320
        %v500 = vunpack.c.h.b16 %v320
        %v501 = vunpack.c.l.b16 %v321
        %v502 = vunpack.c.h.b16 %v321
        %v503 = vunpack.c.l.b16 %v322
        %v504 = vunpack.c.h.b16 %v322
        %v505 = vunpack.c.l.b16 %v323
        %v506 = vunpack.c.h.b16 %v323
        %v507 = vunpack.c.l.b16 %v324
        %v508 = vunpack.c.h.b16 %v324
        %v509 = vunpack.c.l.b16 %v325
        %v510 = vunpack.c.h.b16 %v325
        %v511 = vunpack.c.l.b16 %v326
        %v512 = vunpack.c.h.b16 %v326
        %v513 = vunpack.c.l.b16 %v327
        %v514 = vunpack.c.h.b16 %v327
        %v515 = vunpack.c.l.b16 %v328
        %v516 = vunpack.c.h.b16 %v328
        %v517 = vunpack.c.l.b16 %v329
        %v518 = vunpack.c.h.b16 %v329
        %v519 = vunpack.c.l.b16 %v330
        %v520 = vunpack.c.h.b16 %v330
        %v521 = vunpack.c.l.b16 %v331
        %v522 = vunpack.c.h.b16 %v331
        %v523 = vunpack.c.l.b16 %v332
        %v524 = vunpack.c.h.b16 %v332
        %v525 = vunpack.c.l.b16 %v333
        %v526 = vunpack.c.h.b16 %v333
        %v527 = vunpack.c.l.b16 %v334
        %v528 = vunpack.c.h.b16 %v334
        %v529 = vunpack.c.l.b16 %v335
        %v530 = vunpack.c.h.b16 %v335
        %v531 = vunpack.c.l.b16 %v336
        %v532 = vunpack.c.h.b16 %v336
        %v533 = vunpack.c.l.b16 %v337
        %v534 = vunpack.c.h.b16 %v337
        %v535 = vunpack.c.l.b16 %v338
        %v536 = vunpack.c.h.b16 %v338
        %v537 = vunpack.c.l.b16 %v339
        %v538 = vunpack.c.h.b16 %v339
        %v539 = vpack.c.b16 %v415, %v411
        %v540 = vpack.c.b16 %v416, %v412
        %v541 = vpack.c.b16 %v417, %v413
        %v542 = vpack.c.b16 %v418, %v414
        %v543 = vpack.c.b16 %v423, %v419
        %v544 = vpack.c.b16 %v424, %v420
        %v545 = vpack.c.b16 %v425, %v421
        %v546 = vpack.c.b16 %v426, %v422
        %v547 = vpack.c.b16 %v431, %v427
        %v548 = vpack.c.b16 %v432, %v428
        %v549 = vpack.c.b16 %v433, %v429
        %v550 = vpack.c.b16 %v434, %v430
        %v551 = vpack.c.b16 %v439, %v435
        %v552 = vpack.c.b16 %v440, %v436
        %v553 = vpack.c.b16 %v441, %v437
        %v554 = vpack.c.b16 %v442, %v438
        %v555 = vpack.c.b16 %v447, %v443
        %v556 = vpack.c.b16 %v448, %v444
        %v557 = vpack.c.b16 %v449, %v445
        %v558 = vpack.c.b16 %v450, %v446
        %v559 = vpack.c.b16 %v455, %v451
        %v560 = vpack.c.b16 %v456, %v452
        %v561 = vpack.c.b16 %v457, %v453
        %v562 = vpack.c.b16 %v458, %v454
        %v563 = vpack.c.b16 %v463, %v459
        %v564 = vpack.c.b16 %v464, %v460
        %v565 = vpack.c.b16 %v465, %v461
        %v566 = vpack.c.b16 %v466, %v462
        %v567 = vpack.c.b16 %v471, %v467
        %v568 = vpack.c.b16 %v472, %v468
        %v569 = vpack.c.b16 %v473, %v469
        %v570 = vpack.c.b16 %v474, %v470
        %v571 = vpack.c.b16 %v479, %v475
        %v572 = vpack.c.b16 %v480, %v476
        %v573 = vpack.c.b16 %v481, %v477
        %v574 = vpack.c.b16 %v482, %v478
        %v575 = vpack.c.b16 %v487, %v483
        %v576 = vpack.c.b16 %v488, %v484
        %v577 = vpack.c.b16 %v489, %v485
        %v578 = vpack.c.b16 %v490, %v486
        %v579 = vpack.c.b16 %v495, %v491
        %v580 = vpack.c.b16 %v496, %v492
        %v581 = vpack.c.b16 %v497, %v493
        %v582 = vpack.c.b16 %v498, %v494
        %v583 = vpack.c.b16 %v503, %v499
        %v584 = vpack.c.b16 %v504, %v500
        %v585 = vpack.c.b16 %v505, %v501
        %v586 = vpack.c.b16 %v506, %v502
        %v587 = vpack.c.b16 %v511, %v507
        %v588 = vpack.c.b16 %v512, %v508
        %v589 = vpack.c.b16 %v513, %v509
        %v590 = vpack.c.b16 %v514, %v510
        %v591 = vpack.c.b16 %v519, %v515
        %v592 = vpack.c.b16 %v520, %v516
        %v593 = vpack.c.b16 %v521, %v517
        %v594 = vpack.c.b16 %v522, %v518
        %v595 = vpack.c.b16 %v527, %v523
        %v596 = vpack.c.b16 %v528, %v524
        %v597 = vpack.c.b16 %v529, %v525
        %v598 = vpack.c.b16 %v530, %v526
        %v599 = vpack.c.b16 %v535, %v531
        %v600 = vpack.c.b16 %v536, %v532
        %v601 = vpack.c.b16 %v537, %v533
        %v602 = vpack.c.b16 %v538, %v534
        %667 = vmatprep.subr.bf16.mxu0 %v568
        %668 = vmatpush1.bf16.msra.mxu0 %v567
        %669 = vmatprep.subr.bf16.mxu0 %v564
        %670 = vmatpush1.bf16.msra.mxu0 %v563
        %671 = vmatprep.subr.bf16.mxu0 %v560
        %672 = vmatpush1.bf16.msra.mxu0 %v559
        %673 = vmatprep.subr.bf16.mxu0 %v556
        %674 = vmatpush1.bf16.msra.mxu0 %v555
        %675 = vmatprep.subr.bf16.mxu0 %v552
        %676 = vmatpush1.bf16.msra.mxu0 %v551
        %677 = vmatprep.subr.bf16.mxu0 %v548
        %678 = vmatpush1.bf16.msra.mxu0 %v547
        %679 = vmatprep.subr.bf16.mxu0 %v544
        %680 = vmatpush1.bf16.msra.mxu0 %v543
        %681 = vmatprep.subr.bf16.mxu0 %v540
        %682 = vmatpush1.bf16.msra.mxu0 %v539
        %683 = vmatprep.subr.bf16.mxu0 %v600
        %684 = vmatpush2.bf16.msra.mxu0 %v599
        %685 = vmatprep.subr.bf16.mxu0 %v596
        %686 = vmatpush2.bf16.msra.mxu0 %v595
        %687 = vmatprep.subr.bf16.mxu0 %v592
        %688 = vmatpush2.bf16.msra.mxu0 %v591
        %689 = vmatprep.subr.bf16.mxu0 %v588
        %690 = vmatpush2.bf16.msra.mxu0 %v587
        %691 = vmatprep.subr.bf16.mxu0 %v584
        %692 = vmatpush2.bf16.msra.mxu0 %v583
        %693 = vmatprep.subr.bf16.mxu0 %v580
        %694 = vmatpush2.bf16.msra.mxu0 %v579
        %695 = vmatprep.subr.bf16.mxu0 %v576
        %696 = vmatpush2.bf16.msra.mxu0 %v575
        %697 = vmatprep.subr.bf16.mxu0 %v572
        %698 = vmatpush2.bf16.msra.mxu0 %v571
        %699 = vmatprep.mubr.bf16.mxu0 %v344
        %700 = vmatmul.mubr.bf16.gmra.mxu0 %v343
        %v701 = vpop.f32.mrf.mxu0
        %v702 = vadd.f32 0.0, %v701
        %v703 = vpop.f32.mrf.mxu0
        %v704 = vadd.f32 0.0, %v703
        %v705 = vpop.f32.mrf.mxu0
        %v706 = vpop.f32.mrf.mxu0
        %707 = vdwg.mxu0
        %708 = vmatprep.subr.bf16.mxu0 %v570
        %709 = vmatpush1.bf16.msra.mxu0 %v569
        %710 = vmatprep.subr.bf16.mxu0 %v566
        %711 = vmatpush1.bf16.msra.mxu0 %v565
        %712 = vmatprep.subr.bf16.mxu0 %v562
        %713 = vmatpush1.bf16.msra.mxu0 %v561
        %714 = vmatprep.subr.bf16.mxu0 %v558
        %715 = vmatpush1.bf16.msra.mxu0 %v557
        %716 = vmatprep.subr.bf16.mxu0 %v554
        %717 = vmatpush1.bf16.msra.mxu0 %v553
        %718 = vmatprep.subr.bf16.mxu0 %v550
        %719 = vmatpush1.bf16.msra.mxu0 %v549
        %720 = vmatprep.subr.bf16.mxu0 %v546
        %721 = vmatpush1.bf16.msra.mxu0 %v545
        %722 = vmatprep.subr.bf16.mxu0 %v542
        %723 = vmatpush1.bf16.msra.mxu0 %v541
        %724 = vmatprep.subr.bf16.mxu0 %v602
        %725 = vmatpush2.bf16.msra.mxu0 %v601
        %726 = vmatprep.subr.bf16.mxu0 %v598
        %727 = vmatpush2.bf16.msra.mxu0 %v597
        %728 = vmatprep.subr.bf16.mxu0 %v594
        %729 = vmatpush2.bf16.msra.mxu0 %v593
        %730 = vmatprep.subr.bf16.mxu0 %v590
        %731 = vmatpush2.bf16.msra.mxu0 %v589
        %732 = vmatprep.subr.bf16.mxu0 %v586
        %733 = vmatpush2.bf16.msra.mxu0 %v585
        %734 = vmatprep.subr.bf16.mxu0 %v582
        %735 = vmatpush2.bf16.msra.mxu0 %v581
        %736 = vmatprep.subr.bf16.mxu0 %v578
        %737 = vmatpush2.bf16.msra.mxu0 %v577
        %738 = vmatprep.subr.bf16.mxu0 %v574
        %739 = vmatpush2.bf16.msra.mxu0 %v573
        %740 = vmatprep.mubr.bf16.mxu0 %v344
        %741 = vmatmul.mubr.bf16.gmra.mxu0 %v343
        %v742 = vpop.f32.mrf.mxu0
        %v743 = vadd.f32 0.0, %v742
        %v744 = vpop.f32.mrf.mxu0
        %v745 = vadd.f32 0.0, %v744
        %v746 = vpop.f32.mrf.mxu0
        %v747 = vpop.f32.mrf.mxu0
        %748 = vdwg.mxu0
        %v749 = vadd.f32 %v271, %v702
        %v750 = vadd.f32 %v272, %v704
        %v751 = vadd.f32 %v273, %v743
        %v752 = vadd.f32 %v274, %v745
        %753 = vst [vmem:[%s238] sm:$0xff] %v749
        %754 = vst [vmem:[%s238 + $0x8] sm:$0xff] %v750
        %755 = vst [vmem:[%s238 + $0x10] sm:$0xff] %v751
        %756 = vst [vmem:[%s238 + $0x18] sm:$0xff] %v752
        // Predicated region
        $region49: #{tpu_custom_call.1} parent=31 // pred_check
          %p757 = pneg %p241
        $region50: #{tpu_custom_call.1} parent=31 // pred_check_branch
          %759 = sbr.rel (%p757) target = $region52
        $region51: #{tpu_custom_call.1} parent=31 // pred_region
          %v760 = vld [vmem:[%s238] sm:$0xff]
          %v761 = vld [vmem:[%s238 + $0x8] sm:$0xff]
          %v762 = vld [vmem:[%s238 + $0x10] sm:$0xff]
          %v763 = vld [vmem:[%s238 + $0x18] sm:$0xff]
          %v764 = vmax.f32 %v760, %v761
          %v765 = vmax.f32 %v762, %v763
          %v766 = vmax.f32 %v764, %v765
          %767 = vmax.xlane.f32.xlu0 %v766
          %v768 = vpop.xlane.xlu0 %767
          %v769 = vsub.f32 %v760, %v768
          %v770 = vsub.f32 %v761, %v768
          %v771 = vsub.f32 %v762, %v768
          %v772 = vsub.f32 %v763, %v768
          %773 = vst [vmem:[%s238] sm:$0xff] %v769
          %774 = vst [vmem:[%s238 + $0x8] sm:$0xff] %v770
          %775 = vst [vmem:[%s238 + $0x10] sm:$0xff] %v771
          %776 = vst [vmem:[%s238 + $0x18] sm:$0xff] %v772
          %v777 = vld [vmem:[%s238] sm:$0xff]
          %v778 = vld [vmem:[%s238 + $0x8] sm:$0xff]
          %v779 = vld [vmem:[%s238 + $0x10] sm:$0xff]
          %v780 = vld [vmem:[%s238 + $0x18] sm:$0xff]
          %v781 = vmul.f32 %v777, 1.442695
          %v782 = vpow.pop %v781
          %v783 = vmul.f32 %v778, 1.442695
          %v784 = vpow.pop %v783
          %v785 = vmul.f32 %v779, 1.442695
          %v786 = vpow.pop %v785
          %v787 = vmul.f32 %v780, 1.442695
          %v788 = vpow.pop %v787
          %v789 = vadd.f32 %v782, %v784
          %v790 = vadd.f32 %v789, %v786
          %v791 = vadd.f32 %v790, %v788
          %792 = vadd.xlane.f32.xlu0 %v791
          %v793 = vpop.xlane.xlu0 %792
          %v794 = vlog2.pop %v793
          %v795 = vmul.f32 %v794, 0.6931472
          %v796 = vsub.f32 %v777, %v795
          %v797 = vsub.f32 %v778, %v795
          %v798 = vsub.f32 %v779, %v795
          %v799 = vsub.f32 %v780, %v795
          %800 = vst [vmem:[%s238] sm:$0xff] %v796
          %801 = vst [vmem:[%s238 + $0x8] sm:$0xff] %v797
          %802 = vst [vmem:[%s238 + $0x10] sm:$0xff] %v798
          %803 = vst [vmem:[%s238 + $0x18] sm:$0xff] %v799
        $region52: #{tpu_custom_call.1} parent=31 // pred_fallthru
          _
        %s804 = sand.u32 %s116, 1
        %s805 = scalar_lea.sflag [#allocation4], %s804
        %s806 = sand.u32 %s116, 1
        %s807 = smul.addr %s806, 32
        %s808 = scalar_lea.vmem [#allocation8], %s807
        // Predicated region
        $region53: #{tpu_custom_call.1} parent=31 // pred_check
          %p809 = pneg %p126
        $region54: #{tpu_custom_call.1} parent=31 // pred_check_branch
          %811 = sbr.rel (%p809) target = $region56
        $region55: #{tpu_custom_call.1} parent=31 // pred_region
          %s813 = ssub.s32 512, 512
          %814 = vsyncadd %s805, %s813
          %s815 = smul.addr %s25, 4
          %s816 = smul.addr %s815, 128
          %s817 = scalar_lea.hbm %s3, %s816
          %s819 = sshll.u32 %s808, 4
          %s820 = int_to_ptr.vmem [resolvable:$true] %s819
          %822 = dma.vmem_to_hbm [thread:$0]  %s820, 512, %s817, %s805
        $region56: #{tpu_custom_call.1} parent=31 // pred_fallthru
          _
      $region32: #{tpu_custom_call.1} parent=5 // pred_fallthru
        _
      %p823 = scmp.le.s32.totalorder 2, %s16
      // Predicated region
      $region57: #{tpu_custom_call.1} parent=5 // pred_check
        %p824 = pneg %p823
      $region58: #{tpu_custom_call.1} parent=5 // pred_check_branch
        %826 = sbr.rel (%p824) target = $region60
      $region59: #{tpu_custom_call.1} parent=5 // pred_region
        %s827 = ssub.s32 %s16, 2
        // Predicated region
        $region61: #{tpu_custom_call.1} parent=59 // pred_check
          %p828 = pneg %p132
        $region62: #{tpu_custom_call.1} parent=59 // pred_check_branch
          %830 = sbr.rel (%p828) target = $region64
        $region63: #{tpu_custom_call.1} parent=59 // pred_region
          %s831 = sand.u32 %s117, 1
          %s832 = scalar_lea.sflag [#allocation4], %s831
          %s833 = sand.u32 %s117, 1
          %s834 = smul.addr %s833, 32
          %s835 = scalar_lea.vmem [#allocation8], %s834
          %836 = dma.done %s832, 512
        $region64: #{tpu_custom_call.1} parent=59 // pred_fallthru
          _
      $region60: #{tpu_custom_call.1} parent=5 // pred_fallthru
        _
    $region6: #{tpu_custom_call.1} parent=1 // loop_footer
      %s20 = sadd.s32 1, %s16
    $region7: #{tpu_custom_call.1} parent=1 // loop_footer_branch
      %15 = sbr.rel target = $region3
    $region8: #{tpu_custom_call.1} parent=1 // loop_exit
      _
    %837 = vsyncpa [#allocation3], 1
    %s838 = scalar_lea.sflag [#allocation3], 1
    %839 = vsyncpa %s838, 1
    %840 = vsyncpa [#allocation6], 1
    %841 = vsyncpa [#allocation4], 1
    %s842 = scalar_lea.sflag [#allocation4], 1
    %843 = vsyncpa %s842, 1

</llo_original>
